<compile_context>
chip_gen: v7x
topology: tpu7x:2x2x1
jax: 0.10.0
libtpu: 0.0.40
codegen_flags: <defaults>
</compile_context>

<pallas_src>
import jax
import jax.numpy as jnp
from jax.experimental import pallas as pl
from jax.experimental.pallas import tpu as pltpu


# ---------------------------------------------------------------------------
# Kernel
# ---------------------------------------------------------------------------
def _lkfa_fused_kernel(x_ref, w_ref, s_ref, o_ref):
    """All residual ConvBNAct blocks on one (C, T) activation tile.

    x_ref: (C, T)            activation tile (channels on sublanes, H*W on lanes)
    w_ref: (n_blocks, C, C)  1x1 conv weights with BN scale folded in
    s_ref: (n_blocks, C, 1)  fused conv-bias + BN shift (f32)
    o_ref: (C, T)            output after all blocks: y <- y + relu(W_b @ y + s_b)
    """
    n_blocks = w_ref.shape[0]
    y = x_ref[...].astype(jnp.float32)          # residual stream stays f32 on-chip
    for b in range(n_blocks):                   # static unroll: n_blocks is tiny (2)
        z = jnp.dot(w_ref[b], y.astype(w_ref.dtype),
                    preferred_element_type=jnp.float32)     # MXU, f32 accumulate
        y = y + jnp.maximum(z + s_ref[b], 0.0)               # bias+BN+ReLU+residual (f32)
    o_ref[...] = y.astype(o_ref.dtype)


# ---------------------------------------------------------------------------
# Host-side parameter folding (done once, outside the forward path)
# ---------------------------------------------------------------------------
def _fold_bn_params(weight, bias, gamma, beta, running_mean, running_var, eps):
    """Fold eval-mode BN into the 1x1 conv: w' = scale*w; shift' = scale*b + beta - mean*scale."""
    c_out, c_in = weight.shape[0], weight.shape[1]
    w_mat = weight.reshape(c_out, c_in).astype(jnp.float32)
    scale = gamma.astype(jnp.float32) / jnp.sqrt(running_var.astype(jnp.float32) + eps)
    w_fold = w_mat * scale[:, None]
    shift = (bias.astype(jnp.float32) * scale
             + beta.astype(jnp.float32)
             - running_mean.astype(jnp.float32) * scale)
    return w_fold, shift.reshape(c_out, 1)


def prepare_lkfa_params(block_params, *, eps=1e-5, compute_dtype=jnp.bfloat16):
    """Fold BN into the 1x1 convs once and stack for the fused kernel."""
    folded = [_fold_bn_params(*p, eps=eps) for p in block_params]
    w_stack = jnp.stack([w for w, _ in folded]).astype(compute_dtype)   # (n_blocks, C, C)
    s_stack = jnp.stack([s for _, s in folded]).astype(jnp.float32)     # (n_blocks, C, 1)
    return w_stack, s_stack


# ---------------------------------------------------------------------------
# Tile / VMEM sizing
# ---------------------------------------------------------------------------
def _vmem_budget_bytes():
    try:
        cap = pltpu.get_tpu_info().vmem_capacity_bytes
    except Exception:
        cap = 64 * 1024 * 1024          # conservative (v7x-sized) fallback
    return (cap * 3) // 4               # headroom: ~48 MiB on v7x, ~96 MiB on v5e/v6e


def _select_tile_hw(N, C, HW, n_blocks, x_bytes, out_bytes, w_bytes, budget):
    # TODO(synk): for very large C (>= ~1024) add a K-split grid axis with an
    # f32 VMEM accumulator (pl.when init/finalize) instead of clamping tiles.
    weight_bytes = n_blocks * C * (C * w_bytes + 4)        # single-buffered w + f32 shift
    # Per lane-column VMEM cost: double-buffered x and out tiles plus ~3 live
    # f32 (C, T) values inside the kernel body.
    per_col = C * (2 * x_bytes + 2 * out_bytes + 3 * 4)
    tile = max((budget - weight_bytes) // per_col, 128)
    tile = min(tile, 4096, HW)
    if tile < HW:
        tile = max((tile // 128) * 128, 128)               # partial blocks must be lane-dense
    # v7x megacore: make sure both TensorCores get at least one grid iteration.
    if N * pl.cdiv(HW, tile) < 2 and HW > 128:
        tile = max((((HW + 1) // 2 + 127) // 128) * 128, 128)
    return tile


# ---------------------------------------------------------------------------
# pallas_call wrapper
# ---------------------------------------------------------------------------
_SINGLE_BUFFER_WEIGHTS = [None]     # capability cache for pipeline_mode=pl.Buffered(1)


def _build_call(N, C, HW, n_blocks, tile_hw, out_dtype, vmem_limit_bytes,
                single_buffer_weights):
    const_idx = lambda n, j: (0, 0, 0)
    if single_buffer_weights:
        # Grid-invariant inputs: one VMEM buffer is enough (saves C*C*bytes each).
        mode = pl.Buffered(1)
        w_spec = pl.BlockSpec((n_blocks, C, C), const_idx, pipeline_mode=mode)
        s_spec = pl.BlockSpec((n_blocks, C, 1), const_idx, pipeline_mode=mode)
    else:
        w_spec = pl.BlockSpec((n_blocks, C, C), const_idx)
        s_spec = pl.BlockSpec((n_blocks, C, 1), const_idx)

    grid = (N, pl.cdiv(HW, tile_hw))
    return pl.pallas_call(
        _lkfa_fused_kernel,
        out_shape=jax.ShapeDtypeStruct((N, C, HW), out_dtype),
        grid_spec=pltpu.PrefetchScalarGridSpec(
            num_scalar_prefetch=0,
            grid=grid,
            in_specs=[
                pl.BlockSpec((None, C, tile_hw), lambda n, j: (n, 0, j)),   # x
                w_spec,                                                      # weights
                s_spec,                                                      # shifts
            ],
            out_specs=pl.BlockSpec((None, C, tile_hw), lambda n, j: (n, 0, j)),
        ),
        compiler_params=pltpu.CompilerParams(
            dimension_semantics=("parallel", "parallel"),
            vmem_limit_bytes=vmem_limit_bytes),
    )


def lkfa_forward(x_nchw, w_stack, s_stack):
    """LKFA forward: y = x; for each block b: y = y + relu(w[b] @ y + s[b]).

    x_nchw:  (N, C, H, W)
    w_stack: (n_blocks, C, C)  folded weights (compute dtype; bf16 by default)
    s_stack: (n_blocks, C, 1)  folded shifts  (f32)
    Returns (N, C, H, W) in x_nchw.dtype.
    """
    N, C, H, W = x_nchw.shape
    HW = H * W
    n_blocks = w_stack.shape[0]
    assert w_stack.shape == (n_blocks, C, C), "residual blocks require Cout == Cin"

    x = x_nchw.reshape(N, C, HW)                 # free reshape, no HBM transpose
    budget = _vmem_budget_bytes()
    tile_hw = _select_tile_hw(N, C, HW, n_blocks,
                              x_bytes=x.dtype.itemsize,
                              out_bytes=x_nchw.dtype.itemsize,
                              w_bytes=w_stack.dtype.itemsize,
                              budget=budget)

    def run(single_buffer):
        call = _build_call(N, C, HW, n_blocks, tile_hw, x_nchw.dtype,
                           budget, single_buffer)
        return call(x, w_stack, s_stack)

    if _SINGLE_BUFFER_WEIGHTS[0] is None:
        try:
            y = jax.block_until_ready(run(True))
            _SINGLE_BUFFER_WEIGHTS[0] = True
        except Exception:
            _SINGLE_BUFFER_WEIGHTS[0] = False     # older jax: fall back to double-buffered
            y = run(False)
    else:
        y = run(_SINGLE_BUFFER_WEIGHTS[0])
    return y.reshape(N, C, H, W)


# ---------------------------------------------------------------------------
# Pure-JAX reference and self-test
# ---------------------------------------------------------------------------
def _lkfa_reference(x_nchw, block_params, eps=1e-5):
    # f32 reference: y = y + relu(BN(conv1x1(y))) per block (eval-mode BN).
    y = x_nchw
    for (weight, bias, gamma, beta, running_mean, running_var) in block_params:
        C = weight.shape[0]
        z = jnp.einsum('nchw,oc->nohw', y, weight.reshape(C, C),
                       precision=jax.lax.Precision.HIGHEST)
        z = z + bias[None, :, None, None]
        scale = gamma / jnp.sqrt(running_var + eps)
        shift = beta - running_mean * scale
        z = z * scale[None, :, None, None] + shift[None, :, None, None]
        y = y + jnp.maximum(z, 0.0)
    return y


if __name__ == "__main__":
    key = jax.random.PRNGKey(0)
    N, C, H, W = 2, 4, 16, 16
    keys = jax.random.split(key, 13)

    x = jax.random.normal(keys[0], (N, C, H, W), dtype=jnp.float32)

    # Two blocks, mirroring LKFA(kernel_sizes=[7, 13]).
    block_params = []
    for b in range(2):
        kw, kb, kg, kbe, krm, krv = keys[1 + 6 * b: 1 + 6 * (b + 1)]
        weight = jax.random.normal(kw, (C, C, 1, 1), dtype=jnp.float32) * 0.1
        bias = jax.random.normal(kb, (C,), dtype=jnp.float32) * 0.1
        gamma = 1.0 + 0.1 * jax.random.normal(kg, (C,), dtype=jnp.float32)
        beta = 0.1 * jax.random.normal(kbe, (C,), dtype=jnp.float32)
        running_mean = 0.1 * jax.random.normal(krm, (C,), dtype=jnp.float32)
        running_var = 1.0 + 0.1 * jax.random.uniform(krv, (C,), dtype=jnp.float32)
        block_params.append((weight, bias, gamma, beta, running_mean, running_var))

    y_ref = _lkfa_reference(x, block_params)

    # f32 compute path — tight correctness check.
    w_f32, s_f32 = prepare_lkfa_params(block_params, compute_dtype=jnp.float32)
    y_f32 = jax.block_until_ready(lkfa_forward(x, w_f32, s_f32))
    assert y_f32.shape == (N, C, H, W)
    assert jnp.allclose(y_f32, y_ref, atol=3e-3, rtol=3e-3)

    # bf16 compute path (default) — residual stream stays f32 in-kernel.
    w_bf16, s_bf16 = prepare_lkfa_params(block_params, compute_dtype=jnp.bfloat16)
    y_bf16 = jax.block_until_ready(lkfa_forward(x, w_bf16, s_bf16))
    assert y_bf16.shape == (N, C, H, W)
    assert jnp.allclose(y_bf16, y_ref, atol=5e-2, rtol=5e-2)

    print("KERNEL_OK")
</pallas_src>

<mosaic_0001>
module attributes {stable_mosaic.version = 11 : i64} {
  func.func @_lkfa_fused_kernel(%arg0: i32, %arg1: i32, %arg2: memref<1x4x256xf32, #tpu.memory_space<vmem>>, %arg3: memref<2x4x4xf32, #tpu.memory_space<vmem>>, %arg4: memref<2x4x1xf32, #tpu.memory_space<vmem>>, %arg5: memref<1x4x256xf32, #tpu.memory_space<vmem>>) attributes {dimension_semantics = [#tpu.dimension_semantics<parallel>, #tpu.dimension_semantics<parallel>], iteration_bounds = array<i64: 2, 1>, scalar_prefetch = 0 : i64, scratch_operands = 0 : i64, tpu.core_type = #tpu.core_type<tc>, window_params = [{transform_indices = @transform_0, window_bounds = array<i64: 1, 4, 256>}, {pipeline_mode = #tpu.pipeline_mode<synchronous>, transform_indices = @transform_1, window_bounds = array<i64: 2, 4, 4>}, {pipeline_mode = #tpu.pipeline_mode<synchronous>, transform_indices = @transform_2, window_bounds = array<i64: 2, 4, 1>}, {transform_indices = @transform_3, window_bounds = array<i64: 1, 4, 256>}]} {
    %c0 = arith.constant 0 : index
    %c0_0 = arith.constant 0 : index
    %c0_1 = arith.constant 0 : index
    %0 = vector.load %arg2[%c0, %c0_0, %c0_1] : memref<1x4x256xf32, #tpu.memory_space<vmem>>, vector<1x4x256xf32>
    %1 = vector.shape_cast %0 : vector<1x4x256xf32> to vector<4x256xf32>
    %c0_2 = arith.constant 0 : index
    %c0_3 = arith.constant 0 : index
    %c0_4 = arith.constant 0 : index
    %2 = vector.load %arg3[%c0_2, %c0_3, %c0_4] : memref<2x4x4xf32, #tpu.memory_space<vmem>>, vector<1x4x4xf32>
    %3 = vector.shape_cast %2 : vector<1x4x4xf32> to vector<4x4xf32>
    %cst = arith.constant dense<0.000000e+00> : vector<4x256xf32>
    %4 = tpu.matmul %3, %1, %cst {dimension_numbers = #tpu.dot_dimension_numbers<[1], [0], [0], [1], [0, 0, 1, 1], [], []>} : vector<4x4xf32>, vector<4x256xf32>, vector<4x256xf32> -> vector<4x256xf32>
    %c0_5 = arith.constant 0 : index
    %c0_6 = arith.constant 0 : index
    %c0_7 = arith.constant 0 : index
    %5 = vector.load %arg4[%c0_5, %c0_6, %c0_7] : memref<2x4x1xf32, #tpu.memory_space<vmem>>, vector<1x4x1xf32>
    %6 = vector.shape_cast %5 : vector<1x4x1xf32> to vector<4x1xf32>
    %7 = vector.broadcast %6 : vector<4x1xf32> to vector<4x256xf32>
    %8 = arith.addf %4, %7 : vector<4x256xf32>
    %cst_8 = arith.constant 0.000000e+00 : f32
    %9 = vector.broadcast %cst_8 : f32 to vector<4x256xf32>
    %10 = arith.maximumf %8, %9 : vector<4x256xf32>
    %11 = arith.addf %1, %10 : vector<4x256xf32>
    %c1 = arith.constant 1 : index
    %c0_9 = arith.constant 0 : index
    %c0_10 = arith.constant 0 : index
    %12 = vector.load %arg3[%c1, %c0_9, %c0_10] : memref<2x4x4xf32, #tpu.memory_space<vmem>>, vector<1x4x4xf32>
    %13 = vector.shape_cast %12 : vector<1x4x4xf32> to vector<4x4xf32>
    %cst_11 = arith.constant dense<0.000000e+00> : vector<4x256xf32>
    %14 = tpu.matmul %13, %11, %cst_11 {dimension_numbers = #tpu.dot_dimension_numbers<[1], [0], [0], [1], [0, 0, 1, 1], [], []>} : vector<4x4xf32>, vector<4x256xf32>, vector<4x256xf32> -> vector<4x256xf32>
    %c1_12 = arith.constant 1 : index
    %c0_13 = arith.constant 0 : index
    %c0_14 = arith.constant 0 : index
    %15 = vector.load %arg4[%c1_12, %c0_13, %c0_14] : memref<2x4x1xf32, #tpu.memory_space<vmem>>, vector<1x4x1xf32>
    %16 = vector.shape_cast %15 : vector<1x4x1xf32> to vector<4x1xf32>
    %17 = vector.broadcast %16 : vector<4x1xf32> to vector<4x256xf32>
    %18 = arith.addf %14, %17 : vector<4x256xf32>
    %cst_15 = arith.constant 0.000000e+00 : f32
    %19 = vector.broadcast %cst_15 : f32 to vector<4x256xf32>
    %20 = arith.maximumf %18, %19 : vector<4x256xf32>
    %21 = arith.addf %11, %20 : vector<4x256xf32>
    %c0_16 = arith.constant 0 : index
    %c0_17 = arith.constant 0 : index
    %c0_18 = arith.constant 0 : index
    %22 = vector.load %arg5[%c0_16, %c0_17, %c0_18] : memref<1x4x256xf32, #tpu.memory_space<vmem>>, vector<1x4x256xf32>
    %23 = vector.shape_cast %22 : vector<1x4x256xf32> to vector<4x256xf32>
    %24 = vector.shape_cast %21 : vector<4x256xf32> to vector<1x4x256xf32>
    tpu.vector_store %arg5[%c0_16, %c0_17, %c0_18], %24 {strides = array<i32>} : memref<1x4x256xf32, #tpu.memory_space<vmem>>, vector<1x4x256xf32>,
    return
  }
  func.func @transform_0(%arg0: i32, %arg1: i32) -> (i32, i32, i32) {
    %c0_i32 = arith.constant 0 : i32
    %c0_i32_0 = arith.constant 0 : i32
    return %arg0, %c0_i32, %arg1 : i32, i32, i32
  }
  func.func @transform_1(%arg0: i32, %arg1: i32) -> (i32, i32, i32) {
    %c0_i32 = arith.constant 0 : i32
    %c0_i32_0 = arith.constant 0 : i32
    %c0_i32_1 = arith.constant 0 : i32
    %c0_i32_2 = arith.constant 0 : i32
    return %c0_i32, %c0_i32_0, %c0_i32_1 : i32, i32, i32
  }
  func.func @transform_2(%arg0: i32, %arg1: i32) -> (i32, i32, i32) {
    %c0_i32 = arith.constant 0 : i32
    %c0_i32_0 = arith.constant 0 : i32
    %c0_i32_1 = arith.constant 0 : i32
    %c0_i32_2 = arith.constant 0 : i32
    return %c0_i32, %c0_i32_0, %c0_i32_1 : i32, i32, i32
  }
  func.func @transform_3(%arg0: i32, %arg1: i32) -> (i32, i32, i32) {
    %c0_i32 = arith.constant 0 : i32
    %c0_i32_0 = arith.constant 0 : i32
    return %arg0, %c0_i32, %arg1 : i32, i32, i32
  }
}

module attributes {stable_mosaic.version = 11 : i64} {
  func.func @_lkfa_fused_kernel(%arg0: i32, %arg1: i32, %arg2: memref<1x4x256xf32, #tpu.memory_space<vmem>>, %arg3: memref<2x4x4xf32, #tpu.memory_space<vmem>>, %arg4: memref<2x4x1xf32, #tpu.memory_space<vmem>>, %arg5: memref<1x4x256xf32, #tpu.memory_space<vmem>>) attributes {dimension_semantics = [#tpu.dimension_semantics<parallel>, #tpu.dimension_semantics<parallel>], iteration_bounds = array<i64: 2, 1>, scalar_prefetch = 0 : i64, scratch_operands = 0 : i64, tpu.core_type = #tpu.core_type<tc>, window_params = [{transform_indices = @transform_0, window_bounds = array<i64: 1, 4, 256>}, {pipeline_mode = #tpu.pipeline_mode<synchronous>, transform_indices = @transform_1, window_bounds = array<i64: 2, 4, 4>}, {pipeline_mode = #tpu.pipeline_mode<synchronous>, transform_indices = @transform_2, window_bounds = array<i64: 2, 4, 1>}, {transform_indices = @transform_3, window_bounds = array<i64: 1, 4, 256>}]} {
    %c0 = arith.constant 0 : index
    %c0_0 = arith.constant 0 : index
    %c0_1 = arith.constant 0 : index
    %0 = vector.load %arg2[%c0, %c0_0, %c0_1] : memref<1x4x256xf32, #tpu.memory_space<vmem>>, vector<1x4x256xf32>
    %1 = vector.shape_cast %0 : vector<1x4x256xf32> to vector<4x256xf32>
    %c0_2 = arith.constant 0 : index
    %c0_3 = arith.constant 0 : index
    %c0_4 = arith.constant 0 : index
    %2 = vector.load %arg3[%c0_2, %c0_3, %c0_4] : memref<2x4x4xf32, #tpu.memory_space<vmem>>, vector<1x4x4xf32>
    %3 = vector.shape_cast %2 : vector<1x4x4xf32> to vector<4x4xf32>
    %cst = arith.constant dense<0.000000e+00> : vector<4x256xf32>
    %4 = tpu.matmul %3, %1, %cst {dimension_numbers = #tpu.dot_dimension_numbers<[1], [0], [0], [1], [0, 0, 1, 1], [], []>} : vector<4x4xf32>, vector<4x256xf32>, vector<4x256xf32> -> vector<4x256xf32>
    %c0_5 = arith.constant 0 : index
    %c0_6 = arith.constant 0 : index
    %c0_7 = arith.constant 0 : index
    %5 = vector.load %arg4[%c0_5, %c0_6, %c0_7] : memref<2x4x1xf32, #tpu.memory_space<vmem>>, vector<1x4x1xf32>
    %6 = vector.shape_cast %5 : vector<1x4x1xf32> to vector<4x1xf32>
    %7 = vector.broadcast %6 : vector<4x1xf32> to vector<4x256xf32>
    %8 = arith.addf %4, %7 : vector<4x256xf32>
    %cst_8 = arith.constant 0.000000e+00 : f32
    %9 = vector.broadcast %cst_8 : f32 to vector<4x256xf32>
    %10 = arith.maximumf %8, %9 : vector<4x256xf32>
    %11 = arith.addf %1, %10 : vector<4x256xf32>
    %c1 = arith.constant 1 : index
    %c0_9 = arith.constant 0 : index
    %c0_10 = arith.constant 0 : index
    %12 = vector.load %arg3[%c1, %c0_9, %c0_10] : memref<2x4x4xf32, #tpu.memory_space<vmem>>, vector<1x4x4xf32>
    %13 = vector.shape_cast %12 : vector<1x4x4xf32> to vector<4x4xf32>
    %cst_11 = arith.constant dense<0.000000e+00> : vector<4x256xf32>
    %14 = tpu.matmul %13, %11, %cst_11 {dimension_numbers = #tpu.dot_dimension_numbers<[1], [0], [0], [1], [0, 0, 1, 1], [], []>} : vector<4x4xf32>, vector<4x256xf32>, vector<4x256xf32> -> vector<4x256xf32>
    %c1_12 = arith.constant 1 : index
    %c0_13 = arith.constant 0 : index
    %c0_14 = arith.constant 0 : index
    %15 = vector.load %arg4[%c1_12, %c0_13, %c0_14] : memref<2x4x1xf32, #tpu.memory_space<vmem>>, vector<1x4x1xf32>
    %16 = vector.shape_cast %15 : vector<1x4x1xf32> to vector<4x1xf32>
    %17 = vector.broadcast %16 : vector<4x1xf32> to vector<4x256xf32>
    %18 = arith.addf %14, %17 : vector<4x256xf32>
    %cst_15 = arith.constant 0.000000e+00 : f32
    %19 = vector.broadcast %cst_15 : f32 to vector<4x256xf32>
    %20 = arith.maximumf %18, %19 : vector<4x256xf32>
    %21 = arith.addf %11, %20 : vector<4x256xf32>
    %c0_16 = arith.constant 0 : index
    %c0_17 = arith.constant 0 : index
    %c0_18 = arith.constant 0 : index
    %22 = vector.load %arg5[%c0_16, %c0_17, %c0_18] : memref<1x4x256xf32, #tpu.memory_space<vmem>>, vector<1x4x256xf32>
    %23 = vector.shape_cast %22 : vector<1x4x256xf32> to vector<4x256xf32>
    %24 = vector.shape_cast %21 : vector<4x256xf32> to vector<1x4x256xf32>
    tpu.vector_store %arg5[%c0_16, %c0_17, %c0_18], %24 {strides = array<i32>} : memref<1x4x256xf32, #tpu.memory_space<vmem>>, vector<1x4x256xf32>,
    return
  }
  func.func @transform_0(%arg0: i32, %arg1: i32) -> (i32, i32, i32) {
    %c0_i32 = arith.constant 0 : i32
    %c0_i32_0 = arith.constant 0 : i32
    return %arg0, %c0_i32, %arg1 : i32, i32, i32
  }
  func.func @transform_1(%arg0: i32, %arg1: i32) -> (i32, i32, i32) {
    %c0_i32 = arith.constant 0 : i32
    %c0_i32_0 = arith.constant 0 : i32
    %c0_i32_1 = arith.constant 0 : i32
    %c0_i32_2 = arith.constant 0 : i32
    return %c0_i32, %c0_i32_0, %c0_i32_1 : i32, i32, i32
  }
  func.func @transform_2(%arg0: i32, %arg1: i32) -> (i32, i32, i32) {
    %c0_i32 = arith.constant 0 : i32
    %c0_i32_0 = arith.constant 0 : i32
    %c0_i32_1 = arith.constant 0 : i32
    %c0_i32_2 = arith.constant 0 : i32
    return %c0_i32, %c0_i32_0, %c0_i32_1 : i32, i32, i32
  }
  func.func @transform_3(%arg0: i32, %arg1: i32) -> (i32, i32, i32) {
    %c0_i32 = arith.constant 0 : i32
    %c0_i32_0 = arith.constant 0 : i32
    return %arg0, %c0_i32, %arg1 : i32, i32, i32
  }
}

</mosaic_0001>

<llo_original>
// kernel: tpu_custom_call.1
$region0: #{tpu_custom_call.1}
  #allocation0 [shape = 'u32[]', space=smem, size = 0x4, offset = 0x4, fixed_abs, tag = 'smem constant byte address 0x4 - core index']
  #allocation1 [shape = 'u32[144,128]{1,0:T(1,128)}', space=vmem, size = 0x12000, scoped, tag = 'internal scratch']
  %s0 = inlined_call_operand.hbm [shape: f32[2,4,256], index: 0, kind: input, shape index: {}]
  %s1 = inlined_call_operand.vmem [shape: f32[2,4,4], index: 1, kind: input, shape index: {}]
  %s2 = inlined_call_operand.vmem [shape: f32[2,4,1], index: 2, kind: input, shape index: {}]
  %s3 = inlined_call_operand.hbm [shape: f32[2,4,256], index: 3, kind: output, shape index: {}]
  %s4 = sld [smem:[#allocation0]]
  $region49: #{tpu_custom_call.1} parent=0
    _
  %s6 = ssub.s32 1, %s4
  %s7 = scalar_select 0, %s6, %s4
  $region1: #{tpu_custom_call.1} parent=0
    #allocation2 [shape = 'u8[8192]{0}', space=vmem, size = 0x2000, scoped, tag = 'input window, operand 0']
    #allocation3 [shape = 's32[2]{0}', space=sflag, size = 0x8, scoped, tag = 'scoped memory for tpu_custom_call.1']
    #allocation4 [shape = 's32[2]{0}', space=sflag, size = 0x8, scoped, tag = 'scoped memory for tpu_custom_call.1']
    #allocation5 [shape = 'u8[8192]{0}', space=vmem, size = 0x2000, scoped, tag = 'output window, operand 0']
    %8 = vsyncpa [#allocation3], 0
    %s9 = scalar_lea.sflag [#allocation3], 1
    %10 = vsyncpa %s9, 0
    %11 = vsyncpa [#allocation4], 0
    %s12 = scalar_lea.sflag [#allocation4], 1
    %13 = vsyncpa %s12, 0
    loop: start=0, step=1, limit=4
    $region2: #{tpu_custom_call.1} parent=1 // loop_pre_header
      _
    $region3: #{tpu_custom_call.1} parent=1 // loop_header
      %s15 = sphi 0, %s19
      %p16 = scmp.ge.s32.totalorder %s15, 4
      %s22 = sphi 0, %s34
      %s23 = sphi 0, %s30
      %s24 = sphi 0, %s22
      %s25 = sphi 0, %s23
      %s26 = sphi 0, %s24
      %s27 = sphi 0, %s25
      %s39 = sphi 0, %s41
      %s42 = sphi 0, %s39
      %s43 = sphi 0, %s42
      %s59 = sphi 0, %s43
      %s63 = sphi 0, %s63
      %s65 = sphi 0, %s63
      %s66 = sphi 0, %s65
      %s80 = sphi 0, %s66
      %s84 = sphi 0, %s84
      %s86 = sphi 0, %s84
      %s87 = sphi 0, %s86
      %s101 = sphi 0, %s87
      %s109 = sphi 0, %s111
      %s112 = sphi 0, %s109
      %s113 = sphi 0, %s112
      %s129 = sphi 0, %s113
    $region4: #{tpu_custom_call.1} parent=1 // loop_header_branch
      %18 = sbr.rel (%p16) target = $region8
    $region5: #{tpu_custom_call.1} parent=1 // loop_body
      %s20 = ssub.s32 %s15, 1
      %s21 = ssub.s32 %s15, 2
      %s28 = sadd.s32 1, %s23
      %p29 = scmp.ge.s32.totalorder %s28, 1
      %s30 = scalar_select %p29, 0, %s28
      %s31 = sadd.s32 1, %s22
      %s32 = scalar_select %p29, %s31, %s22
      %p33 = scmp.ge.s32.totalorder %s32, 2
      %s34 = scalar_select %p33, 0, %s32
      %s35 = ssub.s32 %s22, %s34
      %s36 = ssub.s32 %s23, %s30
      %s37 = sor.u32 %s35, %s36
      %p38 = scmp.eq.s32.totalorder %s37, 0
      %s40 = sadd.s32 %s39, 1
      %s41 = scalar_select %p38, %s39, %s40
      %p44 = pneg %p38
      %p45 = scmp.eq.s32.totalorder %s15, 1
      %p46 = por %p44, %p45
      %p47 = scmp.ne.s32.totalorder %s39, %s42
      %p48 = scmp.eq.s32.totalorder %s15, 0
      %p49 = por %p47, %p48
      %p50 = scmp.ne.s32.totalorder %s39, %s42
      %p51 = scmp.eq.s32.totalorder %s20, 1
      %p52 = por %p50, %p51
      %p53 = scmp.ne.s32.totalorder %s42, %s43
      %p54 = scmp.eq.s32.totalorder %s20, 0
      %p55 = por %p53, %p54
      %p56 = scmp.ne.s32.totalorder %s42, %s43
      %p57 = scmp.eq.s32.totalorder %s21, 1
      %p58 = por %p56, %p57
      %p60 = scmp.ne.s32.totalorder %s43, %s59
      %p61 = scmp.eq.s32.totalorder %s21, 0
      %p62 = por %p60, %p61
      %s64 = sadd.s32 %s63, 1
      %p67 = scmp.eq.s32.totalorder %s15, 1
      %p68 = scmp.ne.s32.totalorder %s63, %s65
      %p69 = scmp.eq.s32.totalorder %s15, 0
      %p70 = por %p68, %p69
      %p71 = scmp.ne.s32.totalorder %s63, %s65
      %p72 = scmp.eq.s32.totalorder %s20, 1
      %p73 = por %p71, %p72
      %p74 = scmp.ne.s32.totalorder %s65, %s66
      %p75 = scmp.eq.s32.totalorder %s20, 0
      %p76 = por %p74, %p75
      %p77 = scmp.ne.s32.totalorder %s65, %s66
      %p78 = scmp.eq.s32.totalorder %s21, 1
      %p79 = por %p77, %p78
      %p81 = scmp.ne.s32.totalorder %s66, %s80
      %p82 = scmp.eq.s32.totalorder %s21, 0
      %p83 = por %p81, %p82
      %s85 = sadd.s32 %s84, 1
      %p88 = scmp.eq.s32.totalorder %s15, 1
      %p89 = scmp.ne.s32.totalorder %s84, %s86
      %p90 = scmp.eq.s32.totalorder %s15, 0
      %p91 = por %p89, %p90
      %p92 = scmp.ne.s32.totalorder %s84, %s86
      %p93 = scmp.eq.s32.totalorder %s20, 1
      %p94 = por %p92, %p93
      %p95 = scmp.ne.s32.totalorder %s86, %s87
      %p96 = scmp.eq.s32.totalorder %s20, 0
      %p97 = por %p95, %p96
      %p98 = scmp.ne.s32.totalorder %s86, %s87
      %p99 = scmp.eq.s32.totalorder %s21, 1
      %p100 = por %p98, %p99
      %p102 = scmp.ne.s32.totalorder %s87, %s101
      %p103 = scmp.eq.s32.totalorder %s21, 0
      %p104 = por %p102, %p103
      %s105 = ssub.s32 %s22, %s34
      %s106 = ssub.s32 %s23, %s30
      %s107 = sor.u32 %s105, %s106
      %p108 = scmp.eq.s32.totalorder %s107, 0
      %s110 = sadd.s32 %s109, 1
      %s111 = scalar_select %p108, %s109, %s110
      %p114 = pneg %p108
      %p115 = scmp.eq.s32.totalorder %s15, 1
      %p116 = por %p114, %p115
      %p117 = scmp.ne.s32.totalorder %s109, %s112
      %p118 = scmp.eq.s32.totalorder %s15, 0
      %p119 = por %p117, %p118
      %p120 = scmp.ne.s32.totalorder %s109, %s112
      %p121 = scmp.eq.s32.totalorder %s20, 1
      %p122 = por %p120, %p121
      %p123 = scmp.ne.s32.totalorder %s112, %s113
      %p124 = scmp.eq.s32.totalorder %s20, 0
      %p125 = por %p123, %p124
      %p126 = scmp.ne.s32.totalorder %s112, %s113
      %p127 = scmp.eq.s32.totalorder %s21, 1
      %p128 = por %p126, %p127
      %p130 = scmp.ne.s32.totalorder %s113, %s129
      %p131 = scmp.eq.s32.totalorder %s21, 0
      %p132 = por %p130, %p131
      %p133 = scmp.le.s32.totalorder 1, %s15
      %p134 = scmp.lt.s32.totalorder %s15, 3
      %p135 = pnand %p133, %p134
      %p136 = pneg %p135
      // Predicated region
      $region9: #{tpu_custom_call.1} parent=5 // pred_check
        _
      $region10: #{tpu_custom_call.1} parent=5 // pred_check_branch
        %138 = sbr.rel (%p135) target = $region12
      $region11: #{tpu_custom_call.1} parent=5 // pred_region
        %s139 = ssub.s32 %s15, 1
        // Predicated region
        $region13: #{tpu_custom_call.1} parent=11 // pred_check
          %p140 = pneg %p76
        $region14: #{tpu_custom_call.1} parent=11 // pred_check_branch
          %142 = sbr.rel (%p140) target = $region16
        $region15: #{tpu_custom_call.1} parent=11 // pred_region
          _
        $region16: #{tpu_custom_call.1} parent=11 // pred_fallthru
          _
        // Predicated region
        $region17: #{tpu_custom_call.1} parent=11 // pred_check
          %p143 = pneg %p97
        $region18: #{tpu_custom_call.1} parent=11 // pred_check_branch
          %145 = sbr.rel (%p143) target = $region20
        $region19: #{tpu_custom_call.1} parent=11 // pred_region
          _
        $region20: #{tpu_custom_call.1} parent=11 // pred_fallthru
          _
      $region12: #{tpu_custom_call.1} parent=5 // pred_fallthru
        _
      %p146 = scmp.lt.s32.totalorder %s15, 2
      // Predicated region
      $region21: #{tpu_custom_call.1} parent=5 // pred_check
        %p147 = pneg %p146
      $region22: #{tpu_custom_call.1} parent=5 // pred_check_branch
        %149 = sbr.rel (%p147) target = $region24
      $region23: #{tpu_custom_call.1} parent=5 // pred_region
        // Predicated region
        $region25: #{tpu_custom_call.1} parent=23 // pred_check
          %p150 = pneg %p49
        $region26: #{tpu_custom_call.1} parent=23 // pred_check_branch
          %152 = sbr.rel (%p150) target = $region28
        $region27: #{tpu_custom_call.1} parent=23 // pred_region
          %s153 = sand.u32 %s39, 1
          %s154 = scalar_lea.sflag [#allocation3], %s153
          %s155 = sand.u32 %s39, 1
          %s156 = smul.addr %s155, 8
          %s157 = scalar_lea.vmem [#allocation2], %s156
          %s158 = smul.u32 2, %s23
          %s160 = ssub.s32 128, 128
          %161 = vsyncadd %s154, %s160
          %s162 = smul.addr %s22, 2
          %s163 = sadd.s32 %s158, %s162
          %s164 = smul.addr %s163, 64
          %s165 = scalar_lea.hbm %s0, %s164
          %s167 = sshll.u32 %s157, 4
          %s168 = int_to_ptr.vmem [resolvable:$true] %s167
          %170 = dma.hbm_to_vmem [thread:$0]  %s165, 128, %s168, %s154
        $region28: #{tpu_custom_call.1} parent=23 // pred_fallthru
          _
      $region24: #{tpu_custom_call.1} parent=5 // pred_fallthru
        _
      %p171 = scmp.le.s32.totalorder 1, %s15
      %p172 = scmp.lt.s32.totalorder %s15, 3
      %p173 = pnand %p171, %p172
      %p174 = pneg %p173
      // Predicated region
      $region29: #{tpu_custom_call.1} parent=5 // pred_check
        _
      $region30: #{tpu_custom_call.1} parent=5 // pred_check_branch
        %176 = sbr.rel (%p173) target = $region32
      $region31: #{tpu_custom_call.1} parent=5 // pred_region
        %s177 = ssub.s32 %s15, 1
        %s178 = sand.u32 %s42, 1
        %s179 = scalar_lea.sflag [#allocation3], %s178
        %s180 = sand.u32 %s42, 1
        %s181 = smul.addr %s180, 8
        %s182 = scalar_lea.vmem [#allocation2], %s181
        // Predicated region
        $region33: #{tpu_custom_call.1} parent=31 // pred_check
          %p183 = pneg %p55
        $region34: #{tpu_custom_call.1} parent=31 // pred_check_branch
          %185 = sbr.rel (%p183) target = $region36
        $region35: #{tpu_custom_call.1} parent=31 // pred_region
          %186 = dma.done %s179, 128
        $region36: #{tpu_custom_call.1} parent=31 // pred_fallthru
          _
        %s187 = sand.u32 %s42, 1
        %s188 = scalar_lea.sflag [#allocation3], %s187
        %s189 = sand.u32 %s42, 1
        %s190 = smul.addr %s189, 8
        %s191 = scalar_lea.vmem [#allocation2], %s190
        %p192 = pneg %p55
        %p193 = pneg %p52
        %p194 = pneg %p76
        %p195 = pneg %p73
        %p196 = pneg %p97
        %p197 = pneg %p94
        %p198 = pneg %p125
        %p199 = pneg %p122
        %s200 = sand.u32 %s112, 1
        %s201 = scalar_lea.sflag [#allocation4], %s200
        %s202 = sand.u32 %s112, 1
        %s203 = smul.addr %s202, 8
        %s204 = scalar_lea.vmem [#allocation5], %s203
        %s205 = smul.u32 2, %s25
        %s206 = smul.u32 2, %s25
        %v207 = vld [vmem:[%s182] sm:$0xff]
        %v208 = vld [vmem:[%s1] sm:$0xf]
        %v209 = vld [vmem:[%s2] sm:$0xf]
        %211 = vset.pattern.permute.xlu0 0
        %212 = vperm.xlu0 %211, %v209
        %v213 = vpop.permute.xlu0 %212
        %v216 = vcombine.high %v207, %v207
        %vm217 = vcmask 31744
        %v219 = vsel %vm217, %v208, 0
        %vm221 = vcmask 1043456
        %v222 = vsel %vm221, %v207, 0
        %v224 = vsel %vm221, %v216, 0
        %226 = vmatprep.subr.mxu0 %v224
        %227 = vmatpush1.msra.mxu0 %v222
        %228 = vmatprep.subr.mxu0 0.0
        %229 = vmatpush1.msra.mxu0 0.0
        %230 = vmatprep.subr.mxu0 0.0
        %231 = vmatpush1.msra.mxu0 0.0
        %232 = vmatprep.subr.mxu0 0.0
        %233 = vmatpush1.msra.mxu0 0.0
        %234 = vmatprep.subr.mxu0 0.0
        %235 = vmatpush1.msra.mxu0 0.0
        %236 = vmatprep.subr.mxu0 0.0
        %237 = vmatpush1.msra.mxu0 0.0
        %238 = vmatprep.subr.mxu0 0.0
        %239 = vmatpush1.msra.mxu0 0.0
        %240 = vmatprep.subr.mxu0 0.0
        %241 = vmatpush1.msra.mxu0 0.0
        %242 = vmatprep.subr.mxu0 0.0
        %243 = vmatpush1.msra.mxu0 0.0
        %244 = vmatprep.subr.mxu0 0.0
        %245 = vmatpush1.msra.mxu0 0.0
        %246 = vmatprep.subr.mxu0 0.0
        %247 = vmatpush1.msra.mxu0 0.0
        %248 = vmatprep.subr.mxu0 0.0
        %249 = vmatpush1.msra.mxu0 0.0
        %250 = vmatprep.subr.mxu0 0.0
        %251 = vmatpush1.msra.mxu0 0.0
        %252 = vmatprep.subr.mxu0 0.0
        %253 = vmatpush1.msra.mxu0 0.0
        %254 = vmatprep.subr.mxu0 0.0
        %255 = vmatpush1.msra.mxu0 0.0
        %256 = vmatprep.subr.mxu0 0.0
        %257 = vmatpush1.msra.mxu0 0.0
        %258 = vmatprep.subr.mxu0 0.0
        %259 = vmatpush1.msra.mxu0 0.0
        %260 = vmatprep.subr.mxu0 0.0
        %261 = vmatpush1.msra.mxu0 0.0
        %262 = vmatprep.subr.mxu0 0.0
        %263 = vmatpush1.msra.mxu0 0.0
        %264 = vmatprep.subr.mxu0 0.0
        %265 = vmatpush1.msra.mxu0 0.0
        %266 = vmatprep.subr.mxu0 0.0
        %267 = vmatpush1.msra.mxu0 0.0
        %268 = vmatprep.subr.mxu0 0.0
        %269 = vmatpush1.msra.mxu0 0.0
        %270 = vmatprep.subr.mxu0 0.0
        %271 = vmatpush1.msra.mxu0 0.0
        %272 = vmatprep.subr.mxu0 0.0
        %273 = vmatpush1.msra.mxu0 0.0
        %274 = vmatprep.subr.mxu0 0.0
        %275 = vmatpush1.msra.mxu0 0.0
        %276 = vmatprep.subr.mxu0 0.0
        %277 = vmatpush1.msra.mxu0 0.0
        %278 = vmatprep.subr.mxu0 0.0
        %279 = vmatpush1.msra.mxu0 0.0
        %280 = vmatprep.subr.mxu0 0.0
        %281 = vmatpush1.msra.mxu0 0.0
        %282 = vmatprep.subr.mxu0 0.0
        %283 = vmatpush1.msra.mxu0 0.0
        %284 = vmatprep.subr.mxu0 0.0
        %285 = vmatpush1.msra.mxu0 0.0
        %286 = vmatprep.subr.mxu0 0.0
        %287 = vmatpush1.msra.mxu0 0.0
        %288 = vmatprep.subr.mxu0 0.0
        %289 = vmatpush1.msra.mxu0 0.0
        %290 = vmatprep.mubr.f32.mxu0 0.0
        %291 = vmatmul.mubr.f32.gmra.mrb[0].mxu0 %v219
        %v292 = vpop.f32.mrb[0].mxu0
        %v293 = vadd.f32 %v213, %v292
        %v294 = vpop.f32.mrb[0].mxu0
        %v295 = vadd.f32 %v213, %v294
        %296 = vdwg.mxu0
        %v297 = vmax.f32 %v293, 0.0
        %v298 = vmax.f32 %v295, 0.0
        %v301 = vcombine.low %v297, %v298
        %v303 = vadd.f32 %v207, %v301
        %s304 = scalar_lea.vmem %s1, 4
        %v305 = vld [vmem:[%s304] sm:$0xf]
        %s306 = scalar_lea.vmem %s2, 4
        %v307 = vld [vmem:[%s306] sm:$0xf]
        %309 = vset.pattern.permute.xlu0 0
        %310 = vperm.xlu0 %309, %v307
        %v311 = vpop.permute.xlu0 %310
        %v314 = vcombine.high %v303, %v303
        %v316 = vsel %vm217, %v305, 0
        %v318 = vsel %vm221, %v303, 0
        %v320 = vsel %vm221, %v314, 0
        %322 = vmatprep.subr.mxu0 %v320
        %323 = vmatpush1.msra.mxu0 %v318
        %324 = vmatprep.subr.mxu0 0.0
        %325 = vmatpush1.msra.mxu0 0.0
        %326 = vmatprep.subr.mxu0 0.0
        %327 = vmatpush1.msra.mxu0 0.0
        %328 = vmatprep.subr.mxu0 0.0
        %329 = vmatpush1.msra.mxu0 0.0
        %330 = vmatprep.subr.mxu0 0.0
        %331 = vmatpush1.msra.mxu0 0.0
        %332 = vmatprep.subr.mxu0 0.0
        %333 = vmatpush1.msra.mxu0 0.0
        %334 = vmatprep.subr.mxu0 0.0
        %335 = vmatpush1.msra.mxu0 0.0
        %336 = vmatprep.subr.mxu0 0.0
        %337 = vmatpush1.msra.mxu0 0.0
        %338 = vmatprep.subr.mxu0 0.0
        %339 = vmatpush1.msra.mxu0 0.0
        %340 = vmatprep.subr.mxu0 0.0
        %341 = vmatpush1.msra.mxu0 0.0
        %342 = vmatprep.subr.mxu0 0.0
        %343 = vmatpush1.msra.mxu0 0.0
        %344 = vmatprep.subr.mxu0 0.0
        %345 = vmatpush1.msra.mxu0 0.0
        %346 = vmatprep.subr.mxu0 0.0
        %347 = vmatpush1.msra.mxu0 0.0
        %348 = vmatprep.subr.mxu0 0.0
        %349 = vmatpush1.msra.mxu0 0.0
        %350 = vmatprep.subr.mxu0 0.0
        %351 = vmatpush1.msra.mxu0 0.0
        %352 = vmatprep.subr.mxu0 0.0
        %353 = vmatpush1.msra.mxu0 0.0
        %354 = vmatprep.subr.mxu0 0.0
        %355 = vmatpush1.msra.mxu0 0.0
        %356 = vmatprep.subr.mxu0 0.0
        %357 = vmatpush1.msra.mxu0 0.0
        %358 = vmatprep.subr.mxu0 0.0
        %359 = vmatpush1.msra.mxu0 0.0
        %360 = vmatprep.subr.mxu0 0.0
        %361 = vmatpush1.msra.mxu0 0.0
        %362 = vmatprep.subr.mxu0 0.0
        %363 = vmatpush1.msra.mxu0 0.0
        %364 = vmatprep.subr.mxu0 0.0
        %365 = vmatpush1.msra.mxu0 0.0
        %366 = vmatprep.subr.mxu0 0.0
        %367 = vmatpush1.msra.mxu0 0.0
        %368 = vmatprep.subr.mxu0 0.0
        %369 = vmatpush1.msra.mxu0 0.0
        %370 = vmatprep.subr.mxu0 0.0
        %371 = vmatpush1.msra.mxu0 0.0
        %372 = vmatprep.subr.mxu0 0.0
        %373 = vmatpush1.msra.mxu0 0.0
        %374 = vmatprep.subr.mxu0 0.0
        %375 = vmatpush1.msra.mxu0 0.0
        %376 = vmatprep.subr.mxu0 0.0
        %377 = vmatpush1.msra.mxu0 0.0
        %378 = vmatprep.subr.mxu0 0.0
        %379 = vmatpush1.msra.mxu0 0.0
        %380 = vmatprep.subr.mxu0 0.0
        %381 = vmatpush1.msra.mxu0 0.0
        %382 = vmatprep.subr.mxu0 0.0
        %383 = vmatpush1.msra.mxu0 0.0
        %384 = vmatprep.subr.mxu0 0.0
        %385 = vmatpush1.msra.mxu0 0.0
        %386 = vmatprep.mubr.f32.mxu0 0.0
        %387 = vmatmul.mubr.f32.gmra.mrb[0].mxu0 %v316
        %v388 = vpop.f32.mrb[0].mxu0
        %v389 = vadd.f32 %v311, %v388
        %v390 = vpop.f32.mrb[0].mxu0
        %v391 = vadd.f32 %v311, %v390
        %392 = vdwg.mxu0
        %v393 = vmax.f32 %v389, 0.0
        %v394 = vmax.f32 %v391, 0.0
        %v397 = vcombine.low %v393, %v394
        %v399 = vadd.f32 %v303, %v397
        %400 = vst [vmem:[%s204] sm:$0xff] %v399
        %s401 = sand.u32 %s112, 1
        %s402 = scalar_lea.sflag [#allocation4], %s401
        %s403 = sand.u32 %s112, 1
        %s404 = smul.addr %s403, 8
        %s405 = scalar_lea.vmem [#allocation5], %s404
        // Predicated region
        $region37: #{tpu_custom_call.1} parent=31 // pred_check
          %p406 = pneg %p122
        $region38: #{tpu_custom_call.1} parent=31 // pred_check_branch
          %408 = sbr.rel (%p406) target = $region40
        $region39: #{tpu_custom_call.1} parent=31 // pred_region
          %s409 = smul.u32 2, %s25
          %s411 = ssub.s32 128, 128
          %412 = vsyncadd %s402, %s411
          %s413 = smul.addr %s24, 2
          %s414 = sadd.s32 %s409, %s413
          %s415 = smul.addr %s414, 64
          %s416 = scalar_lea.hbm %s3, %s415
          %s418 = sshll.u32 %s405, 4
          %s419 = int_to_ptr.vmem [resolvable:$true] %s418
          %421 = dma.vmem_to_hbm [thread:$0]  %s419, 128, %s416, %s402
        $region40: #{tpu_custom_call.1} parent=31 // pred_fallthru
          _
      $region32: #{tpu_custom_call.1} parent=5 // pred_fallthru
        _
      %p422 = scmp.le.s32.totalorder 2, %s15
      // Predicated region
      $region41: #{tpu_custom_call.1} parent=5 // pred_check
        %p423 = pneg %p422
      $region42: #{tpu_custom_call.1} parent=5 // pred_check_branch
        %425 = sbr.rel (%p423) target = $region44
      $region43: #{tpu_custom_call.1} parent=5 // pred_region
        %s426 = ssub.s32 %s15, 2
        // Predicated region
        $region45: #{tpu_custom_call.1} parent=43 // pred_check
          %p427 = pneg %p128
        $region46: #{tpu_custom_call.1} parent=43 // pred_check_branch
          %429 = sbr.rel (%p427) target = $region48
        $region47: #{tpu_custom_call.1} parent=43 // pred_region
          %s430 = sand.u32 %s113, 1
          %s431 = scalar_lea.sflag [#allocation4], %s430
          %s432 = sand.u32 %s113, 1
          %s433 = smul.addr %s432, 8
          %s434 = scalar_lea.vmem [#allocation5], %s433
          %435 = dma.done %s431, 128
        $region48: #{tpu_custom_call.1} parent=43 // pred_fallthru
          _
      $region44: #{tpu_custom_call.1} parent=5 // pred_fallthru
        _
    $region6: #{tpu_custom_call.1} parent=1 // loop_footer
      %s19 = sadd.s32 1, %s15
    $region7: #{tpu_custom_call.1} parent=1 // loop_footer_branch
      %14 = sbr.rel target = $region3
    $region8: #{tpu_custom_call.1} parent=1 // loop_exit
      _
    %436 = vsyncpa [#allocation3], 1
    %s437 = scalar_lea.sflag [#allocation3], 1
    %438 = vsyncpa %s437, 1
    %439 = vsyncpa [#allocation4], 1
    %s440 = scalar_lea.sflag [#allocation4], 1
    %441 = vsyncpa %s440, 1

// kernel: tpu_custom_call.1
$region0: #{tpu_custom_call.1}
  #allocation0 [shape = 'u32[]', space=smem, size = 0x4, offset = 0x4, fixed_abs, tag = 'smem constant byte address 0x4 - core index']
  #allocation1 [shape = 'u32[144,128]{1,0:T(1,128)}', space=vmem, size = 0x12000, scoped, tag = 'internal scratch']
  %s0 = inlined_call_operand.hbm [shape: f32[2,4,256], index: 0, kind: input, shape index: {}]
  %s1 = inlined_call_operand.vmem [shape: f32[2,4,4], index: 1, kind: input, shape index: {}]
  %s2 = inlined_call_operand.vmem [shape: f32[2,4,1], index: 2, kind: input, shape index: {}]
  %s3 = inlined_call_operand.hbm [shape: f32[2,4,256], index: 3, kind: output, shape index: {}]
  %s4 = sld [smem:[#allocation0]]
  $region49: #{tpu_custom_call.1} parent=0
    _
  %s6 = ssub.s32 1, %s4
  %s7 = scalar_select 0, %s6, %s4
  $region1: #{tpu_custom_call.1} parent=0
    #allocation2 [shape = 'u8[8192]{0}', space=vmem, size = 0x2000, scoped, tag = 'input window, operand 0']
    #allocation3 [shape = 's32[2]{0}', space=sflag, size = 0x8, scoped, tag = 'scoped memory for tpu_custom_call.1']
    #allocation4 [shape = 's32[2]{0}', space=sflag, size = 0x8, scoped, tag = 'scoped memory for tpu_custom_call.1']
    #allocation5 [shape = 'u8[8192]{0}', space=vmem, size = 0x2000, scoped, tag = 'output window, operand 0']
    %8 = vsyncpa [#allocation3], 0
    %s9 = scalar_lea.sflag [#allocation3], 1
    %10 = vsyncpa %s9, 0
    %11 = vsyncpa [#allocation4], 0
    %s12 = scalar_lea.sflag [#allocation4], 1
    %13 = vsyncpa %s12, 0
    loop: start=0, step=1, limit=4
    $region2: #{tpu_custom_call.1} parent=1 // loop_pre_header
      _
    $region3: #{tpu_custom_call.1} parent=1 // loop_header
      %s15 = sphi 0, %s19
      %p16 = scmp.ge.s32.totalorder %s15, 4
      %s22 = sphi 0, %s34
      %s23 = sphi 0, %s30
      %s24 = sphi 0, %s22
      %s25 = sphi 0, %s23
      %s26 = sphi 0, %s24
      %s27 = sphi 0, %s25
      %s39 = sphi 0, %s41
      %s42 = sphi 0, %s39
      %s43 = sphi 0, %s42
      %s59 = sphi 0, %s43
      %s63 = sphi 0, %s63
      %s65 = sphi 0, %s63
      %s66 = sphi 0, %s65
      %s80 = sphi 0, %s66
      %s84 = sphi 0, %s84
      %s86 = sphi 0, %s84
      %s87 = sphi 0, %s86
      %s101 = sphi 0, %s87
      %s109 = sphi 0, %s111
      %s112 = sphi 0, %s109
      %s113 = sphi 0, %s112
      %s129 = sphi 0, %s113
    $region4: #{tpu_custom_call.1} parent=1 // loop_header_branch
      %18 = sbr.rel (%p16) target = $region8
    $region5: #{tpu_custom_call.1} parent=1 // loop_body
      %s20 = ssub.s32 %s15, 1
      %s21 = ssub.s32 %s15, 2
      %s28 = sadd.s32 1, %s23
      %p29 = scmp.ge.s32.totalorder %s28, 1
      %s30 = scalar_select %p29, 0, %s28
      %s31 = sadd.s32 1, %s22
      %s32 = scalar_select %p29, %s31, %s22
      %p33 = scmp.ge.s32.totalorder %s32, 2
      %s34 = scalar_select %p33, 0, %s32
      %s35 = ssub.s32 %s22, %s34
      %s36 = ssub.s32 %s23, %s30
      %s37 = sor.u32 %s35, %s36
      %p38 = scmp.eq.s32.totalorder %s37, 0
      %s40 = sadd.s32 %s39, 1
      %s41 = scalar_select %p38, %s39, %s40
      %p44 = pneg %p38
      %p45 = scmp.eq.s32.totalorder %s15, 1
      %p46 = por %p44, %p45
      %p47 = scmp.ne.s32.totalorder %s39, %s42
      %p48 = scmp.eq.s32.totalorder %s15, 0
      %p49 = por %p47, %p48
      %p50 = scmp.ne.s32.totalorder %s39, %s42
      %p51 = scmp.eq.s32.totalorder %s20, 1
      %p52 = por %p50, %p51
      %p53 = scmp.ne.s32.totalorder %s42, %s43
      %p54 = scmp.eq.s32.totalorder %s20, 0
      %p55 = por %p53, %p54
      %p56 = scmp.ne.s32.totalorder %s42, %s43
      %p57 = scmp.eq.s32.totalorder %s21, 1
      %p58 = por %p56, %p57
      %p60 = scmp.ne.s32.totalorder %s43, %s59
      %p61 = scmp.eq.s32.totalorder %s21, 0
      %p62 = por %p60, %p61
      %s64 = sadd.s32 %s63, 1
      %p67 = scmp.eq.s32.totalorder %s15, 1
      %p68 = scmp.ne.s32.totalorder %s63, %s65
      %p69 = scmp.eq.s32.totalorder %s15, 0
      %p70 = por %p68, %p69
      %p71 = scmp.ne.s32.totalorder %s63, %s65
      %p72 = scmp.eq.s32.totalorder %s20, 1
      %p73 = por %p71, %p72
      %p74 = scmp.ne.s32.totalorder %s65, %s66
      %p75 = scmp.eq.s32.totalorder %s20, 0
      %p76 = por %p74, %p75
      %p77 = scmp.ne.s32.totalorder %s65, %s66
      %p78 = scmp.eq.s32.totalorder %s21, 1
      %p79 = por %p77, %p78
      %p81 = scmp.ne.s32.totalorder %s66, %s80
      %p82 = scmp.eq.s32.totalorder %s21, 0
      %p83 = por %p81, %p82
      %s85 = sadd.s32 %s84, 1
      %p88 = scmp.eq.s32.totalorder %s15, 1
      %p89 = scmp.ne.s32.totalorder %s84, %s86
      %p90 = scmp.eq.s32.totalorder %s15, 0
      %p91 = por %p89, %p90
      %p92 = scmp.ne.s32.totalorder %s84, %s86
      %p93 = scmp.eq.s32.totalorder %s20, 1
      %p94 = por %p92, %p93
      %p95 = scmp.ne.s32.totalorder %s86, %s87
      %p96 = scmp.eq.s32.totalorder %s20, 0
      %p97 = por %p95, %p96
      %p98 = scmp.ne.s32.totalorder %s86, %s87
      %p99 = scmp.eq.s32.totalorder %s21, 1
      %p100 = por %p98, %p99
      %p102 = scmp.ne.s32.totalorder %s87, %s101
      %p103 = scmp.eq.s32.totalorder %s21, 0
      %p104 = por %p102, %p103
      %s105 = ssub.s32 %s22, %s34
      %s106 = ssub.s32 %s23, %s30
      %s107 = sor.u32 %s105, %s106
      %p108 = scmp.eq.s32.totalorder %s107, 0
      %s110 = sadd.s32 %s109, 1
      %s111 = scalar_select %p108, %s109, %s110
      %p114 = pneg %p108
      %p115 = scmp.eq.s32.totalorder %s15, 1
      %p116 = por %p114, %p115
      %p117 = scmp.ne.s32.totalorder %s109, %s112
      %p118 = scmp.eq.s32.totalorder %s15, 0
      %p119 = por %p117, %p118
      %p120 = scmp.ne.s32.totalorder %s109, %s112
      %p121 = scmp.eq.s32.totalorder %s20, 1
      %p122 = por %p120, %p121
      %p123 = scmp.ne.s32.totalorder %s112, %s113
      %p124 = scmp.eq.s32.totalorder %s20, 0
      %p125 = por %p123, %p124
      %p126 = scmp.ne.s32.totalorder %s112, %s113
      %p127 = scmp.eq.s32.totalorder %s21, 1
      %p128 = por %p126, %p127
      %p130 = scmp.ne.s32.totalorder %s113, %s129
      %p131 = scmp.eq.s32.totalorder %s21, 0
      %p132 = por %p130, %p131
      %p133 = scmp.le.s32.totalorder 1, %s15
      %p134 = scmp.lt.s32.totalorder %s15, 3
      %p135 = pnand %p133, %p134
      %p136 = pneg %p135
      // Predicated region
      $region9: #{tpu_custom_call.1} parent=5 // pred_check
        _
      $region10: #{tpu_custom_call.1} parent=5 // pred_check_branch
        %138 = sbr.rel (%p135) target = $region12
      $region11: #{tpu_custom_call.1} parent=5 // pred_region
        %s139 = ssub.s32 %s15, 1
        // Predicated region
        $region13: #{tpu_custom_call.1} parent=11 // pred_check
          %p140 = pneg %p76
        $region14: #{tpu_custom_call.1} parent=11 // pred_check_branch
          %142 = sbr.rel (%p140) target = $region16
        $region15: #{tpu_custom_call.1} parent=11 // pred_region
          _
        $region16: #{tpu_custom_call.1} parent=11 // pred_fallthru
          _
        // Predicated region
        $region17: #{tpu_custom_call.1} parent=11 // pred_check
          %p143 = pneg %p97
        $region18: #{tpu_custom_call.1} parent=11 // pred_check_branch
          %145 = sbr.rel (%p143) target = $region20
        $region19: #{tpu_custom_call.1} parent=11 // pred_region
          _
        $region20: #{tpu_custom_call.1} parent=11 // pred_fallthru
          _
      $region12: #{tpu_custom_call.1} parent=5 // pred_fallthru
        _
      %p146 = scmp.lt.s32.totalorder %s15, 2
      // Predicated region
      $region21: #{tpu_custom_call.1} parent=5 // pred_check
        %p147 = pneg %p146
      $region22: #{tpu_custom_call.1} parent=5 // pred_check_branch
        %149 = sbr.rel (%p147) target = $region24
      $region23: #{tpu_custom_call.1} parent=5 // pred_region
        // Predicated region
        $region25: #{tpu_custom_call.1} parent=23 // pred_check
          %p150 = pneg %p49
        $region26: #{tpu_custom_call.1} parent=23 // pred_check_branch
          %152 = sbr.rel (%p150) target = $region28
        $region27: #{tpu_custom_call.1} parent=23 // pred_region
          %s153 = sand.u32 %s39, 1
          %s154 = scalar_lea.sflag [#allocation3], %s153
          %s155 = sand.u32 %s39, 1
          %s156 = smul.addr %s155, 8
          %s157 = scalar_lea.vmem [#allocation2], %s156
          %s158 = smul.u32 2, %s23
          %s160 = ssub.s32 128, 128
          %161 = vsyncadd %s154, %s160
          %s162 = smul.addr %s22, 2
          %s163 = sadd.s32 %s158, %s162
          %s164 = smul.addr %s163, 64
          %s165 = scalar_lea.hbm %s0, %s164
          %s167 = sshll.u32 %s157, 4
          %s168 = int_to_ptr.vmem [resolvable:$true] %s167
          %170 = dma.hbm_to_vmem [thread:$0]  %s165, 128, %s168, %s154
        $region28: #{tpu_custom_call.1} parent=23 // pred_fallthru
          _
      $region24: #{tpu_custom_call.1} parent=5 // pred_fallthru
        _
      %p171 = scmp.le.s32.totalorder 1, %s15
      %p172 = scmp.lt.s32.totalorder %s15, 3
      %p173 = pnand %p171, %p172
      %p174 = pneg %p173
      // Predicated region
      $region29: #{tpu_custom_call.1} parent=5 // pred_check
        _
      $region30: #{tpu_custom_call.1} parent=5 // pred_check_branch
        %176 = sbr.rel (%p173) target = $region32
      $region31: #{tpu_custom_call.1} parent=5 // pred_region
        %s177 = ssub.s32 %s15, 1
        %s178 = sand.u32 %s42, 1
        %s179 = scalar_lea.sflag [#allocation3], %s178
        %s180 = sand.u32 %s42, 1
        %s181 = smul.addr %s180, 8
        %s182 = scalar_lea.vmem [#allocation2], %s181
        // Predicated region
        $region33: #{tpu_custom_call.1} parent=31 // pred_check
          %p183 = pneg %p55
        $region34: #{tpu_custom_call.1} parent=31 // pred_check_branch
          %185 = sbr.rel (%p183) target = $region36
        $region35: #{tpu_custom_call.1} parent=31 // pred_region
          %186 = dma.done %s179, 128
        $region36: #{tpu_custom_call.1} parent=31 // pred_fallthru
          _
        %s187 = sand.u32 %s42, 1
        %s188 = scalar_lea.sflag [#allocation3], %s187
        %s189 = sand.u32 %s42, 1
        %s190 = smul.addr %s189, 8
        %s191 = scalar_lea.vmem [#allocation2], %s190
        %p192 = pneg %p55
        %p193 = pneg %p52
        %p194 = pneg %p76
        %p195 = pneg %p73
        %p196 = pneg %p97
        %p197 = pneg %p94
        %p198 = pneg %p125
        %p199 = pneg %p122
        %s200 = sand.u32 %s112, 1
        %s201 = scalar_lea.sflag [#allocation4], %s200
        %s202 = sand.u32 %s112, 1
        %s203 = smul.addr %s202, 8
        %s204 = scalar_lea.vmem [#allocation5], %s203
        %s205 = smul.u32 2, %s25
        %s206 = smul.u32 2, %s25
        %v207 = vld [vmem:[%s182] sm:$0xff]
        %v208 = vld [vmem:[%s1] sm:$0xf]
        %v209 = vld [vmem:[%s2] sm:$0xf]
        %211 = vset.pattern.permute.xlu0 0
        %212 = vperm.xlu0 %211, %v209
        %v213 = vpop.permute.xlu0 %212
        %v216 = vcombine.high %v207, %v207
        %vm217 = vcmask 31744
        %v219 = vsel %vm217, %v208, 0
        %vm221 = vcmask 1043456
        %v222 = vsel %vm221, %v207, 0
        %v224 = vsel %vm221, %v216, 0
        %226 = vmatprep.subr.mxu0 %v224
        %227 = vmatpush1.msra.mxu0 %v222
        %228 = vmatprep.subr.mxu0 0.0
        %229 = vmatpush1.msra.mxu0 0.0
        %230 = vmatprep.subr.mxu0 0.0
        %231 = vmatpush1.msra.mxu0 0.0
        %232 = vmatprep.subr.mxu0 0.0
        %233 = vmatpush1.msra.mxu0 0.0
        %234 = vmatprep.subr.mxu0 0.0
        %235 = vmatpush1.msra.mxu0 0.0
        %236 = vmatprep.subr.mxu0 0.0
        %237 = vmatpush1.msra.mxu0 0.0
        %238 = vmatprep.subr.mxu0 0.0
        %239 = vmatpush1.msra.mxu0 0.0
        %240 = vmatprep.subr.mxu0 0.0
        %241 = vmatpush1.msra.mxu0 0.0
        %242 = vmatprep.subr.mxu0 0.0
        %243 = vmatpush1.msra.mxu0 0.0
        %244 = vmatprep.subr.mxu0 0.0
        %245 = vmatpush1.msra.mxu0 0.0
        %246 = vmatprep.subr.mxu0 0.0
        %247 = vmatpush1.msra.mxu0 0.0
        %248 = vmatprep.subr.mxu0 0.0
        %249 = vmatpush1.msra.mxu0 0.0
        %250 = vmatprep.subr.mxu0 0.0
        %251 = vmatpush1.msra.mxu0 0.0
        %252 = vmatprep.subr.mxu0 0.0
        %253 = vmatpush1.msra.mxu0 0.0
        %254 = vmatprep.subr.mxu0 0.0
        %255 = vmatpush1.msra.mxu0 0.0
        %256 = vmatprep.subr.mxu0 0.0
        %257 = vmatpush1.msra.mxu0 0.0
        %258 = vmatprep.subr.mxu0 0.0
        %259 = vmatpush1.msra.mxu0 0.0
        %260 = vmatprep.subr.mxu0 0.0
        %261 = vmatpush1.msra.mxu0 0.0
        %262 = vmatprep.subr.mxu0 0.0
        %263 = vmatpush1.msra.mxu0 0.0
        %264 = vmatprep.subr.mxu0 0.0
        %265 = vmatpush1.msra.mxu0 0.0
        %266 = vmatprep.subr.mxu0 0.0
        %267 = vmatpush1.msra.mxu0 0.0
        %268 = vmatprep.subr.mxu0 0.0
        %269 = vmatpush1.msra.mxu0 0.0
        %270 = vmatprep.subr.mxu0 0.0
        %271 = vmatpush1.msra.mxu0 0.0
        %272 = vmatprep.subr.mxu0 0.0
        %273 = vmatpush1.msra.mxu0 0.0
        %274 = vmatprep.subr.mxu0 0.0
        %275 = vmatpush1.msra.mxu0 0.0
        %276 = vmatprep.subr.mxu0 0.0
        %277 = vmatpush1.msra.mxu0 0.0
        %278 = vmatprep.subr.mxu0 0.0
        %279 = vmatpush1.msra.mxu0 0.0
        %280 = vmatprep.subr.mxu0 0.0
        %281 = vmatpush1.msra.mxu0 0.0
        %282 = vmatprep.subr.mxu0 0.0
        %283 = vmatpush1.msra.mxu0 0.0
        %284 = vmatprep.subr.mxu0 0.0
        %285 = vmatpush1.msra.mxu0 0.0
        %286 = vmatprep.subr.mxu0 0.0
        %287 = vmatpush1.msra.mxu0 0.0
        %288 = vmatprep.subr.mxu0 0.0
        %289 = vmatpush1.msra.mxu0 0.0
        %290 = vmatprep.mubr.f32.mxu0 0.0
        %291 = vmatmul.mubr.f32.gmra.mrb[0].mxu0 %v219
        %v292 = vpop.f32.mrb[0].mxu0
        %v293 = vadd.f32 %v213, %v292
        %v294 = vpop.f32.mrb[0].mxu0
        %v295 = vadd.f32 %v213, %v294
        %296 = vdwg.mxu0
        %v297 = vmax.f32 %v293, 0.0
        %v298 = vmax.f32 %v295, 0.0
        %v301 = vcombine.low %v297, %v298
        %v303 = vadd.f32 %v207, %v301
        %s304 = scalar_lea.vmem %s1, 4
        %v305 = vld [vmem:[%s304] sm:$0xf]
        %s306 = scalar_lea.vmem %s2, 4
        %v307 = vld [vmem:[%s306] sm:$0xf]
        %309 = vset.pattern.permute.xlu0 0
        %310 = vperm.xlu0 %309, %v307
        %v311 = vpop.permute.xlu0 %310
        %v314 = vcombine.high %v303, %v303
        %v316 = vsel %vm217, %v305, 0
        %v318 = vsel %vm221, %v303, 0
        %v320 = vsel %vm221, %v314, 0
        %322 = vmatprep.subr.mxu0 %v320
        %323 = vmatpush1.msra.mxu0 %v318
        %324 = vmatprep.subr.mxu0 0.0
        %325 = vmatpush1.msra.mxu0 0.0
        %326 = vmatprep.subr.mxu0 0.0
        %327 = vmatpush1.msra.mxu0 0.0
        %328 = vmatprep.subr.mxu0 0.0
        %329 = vmatpush1.msra.mxu0 0.0
        %330 = vmatprep.subr.mxu0 0.0
        %331 = vmatpush1.msra.mxu0 0.0
        %332 = vmatprep.subr.mxu0 0.0
        %333 = vmatpush1.msra.mxu0 0.0
        %334 = vmatprep.subr.mxu0 0.0
        %335 = vmatpush1.msra.mxu0 0.0
        %336 = vmatprep.subr.mxu0 0.0
        %337 = vmatpush1.msra.mxu0 0.0
        %338 = vmatprep.subr.mxu0 0.0
        %339 = vmatpush1.msra.mxu0 0.0
        %340 = vmatprep.subr.mxu0 0.0
        %341 = vmatpush1.msra.mxu0 0.0
        %342 = vmatprep.subr.mxu0 0.0
        %343 = vmatpush1.msra.mxu0 0.0
        %344 = vmatprep.subr.mxu0 0.0
        %345 = vmatpush1.msra.mxu0 0.0
        %346 = vmatprep.subr.mxu0 0.0
        %347 = vmatpush1.msra.mxu0 0.0
        %348 = vmatprep.subr.mxu0 0.0
        %349 = vmatpush1.msra.mxu0 0.0
        %350 = vmatprep.subr.mxu0 0.0
        %351 = vmatpush1.msra.mxu0 0.0
        %352 = vmatprep.subr.mxu0 0.0
        %353 = vmatpush1.msra.mxu0 0.0
        %354 = vmatprep.subr.mxu0 0.0
        %355 = vmatpush1.msra.mxu0 0.0
        %356 = vmatprep.subr.mxu0 0.0
        %357 = vmatpush1.msra.mxu0 0.0
        %358 = vmatprep.subr.mxu0 0.0
        %359 = vmatpush1.msra.mxu0 0.0
        %360 = vmatprep.subr.mxu0 0.0
        %361 = vmatpush1.msra.mxu0 0.0
        %362 = vmatprep.subr.mxu0 0.0
        %363 = vmatpush1.msra.mxu0 0.0
        %364 = vmatprep.subr.mxu0 0.0
        %365 = vmatpush1.msra.mxu0 0.0
        %366 = vmatprep.subr.mxu0 0.0
        %367 = vmatpush1.msra.mxu0 0.0
        %368 = vmatprep.subr.mxu0 0.0
        %369 = vmatpush1.msra.mxu0 0.0
        %370 = vmatprep.subr.mxu0 0.0
        %371 = vmatpush1.msra.mxu0 0.0
        %372 = vmatprep.subr.mxu0 0.0
        %373 = vmatpush1.msra.mxu0 0.0
        %374 = vmatprep.subr.mxu0 0.0
        %375 = vmatpush1.msra.mxu0 0.0
        %376 = vmatprep.subr.mxu0 0.0
        %377 = vmatpush1.msra.mxu0 0.0
        %378 = vmatprep.subr.mxu0 0.0
        %379 = vmatpush1.msra.mxu0 0.0
        %380 = vmatprep.subr.mxu0 0.0
        %381 = vmatpush1.msra.mxu0 0.0
        %382 = vmatprep.subr.mxu0 0.0
        %383 = vmatpush1.msra.mxu0 0.0
        %384 = vmatprep.subr.mxu0 0.0
        %385 = vmatpush1.msra.mxu0 0.0
        %386 = vmatprep.mubr.f32.mxu0 0.0
        %387 = vmatmul.mubr.f32.gmra.mrb[0].mxu0 %v316
        %v388 = vpop.f32.mrb[0].mxu0
        %v389 = vadd.f32 %v311, %v388
        %v390 = vpop.f32.mrb[0].mxu0
        %v391 = vadd.f32 %v311, %v390
        %392 = vdwg.mxu0
        %v393 = vmax.f32 %v389, 0.0
        %v394 = vmax.f32 %v391, 0.0
        %v397 = vcombine.low %v393, %v394
        %v399 = vadd.f32 %v303, %v397
        %400 = vst [vmem:[%s204] sm:$0xff] %v399
        %s401 = sand.u32 %s112, 1
        %s402 = scalar_lea.sflag [#allocation4], %s401
        %s403 = sand.u32 %s112, 1
        %s404 = smul.addr %s403, 8
        %s405 = scalar_lea.vmem [#allocation5], %s404
        // Predicated region
        $region37: #{tpu_custom_call.1} parent=31 // pred_check
          %p406 = pneg %p122
        $region38: #{tpu_custom_call.1} parent=31 // pred_check_branch
          %408 = sbr.rel (%p406) target = $region40
        $region39: #{tpu_custom_call.1} parent=31 // pred_region
          %s409 = smul.u32 2, %s25
          %s411 = ssub.s32 128, 128
          %412 = vsyncadd %s402, %s411
          %s413 = smul.addr %s24, 2
          %s414 = sadd.s32 %s409, %s413
          %s415 = smul.addr %s414, 64
          %s416 = scalar_lea.hbm %s3, %s415
          %s418 = sshll.u32 %s405, 4
          %s419 = int_to_ptr.vmem [resolvable:$true] %s418
          %421 = dma.vmem_to_hbm [thread:$0]  %s419, 128, %s416, %s402
        $region40: #{tpu_custom_call.1} parent=31 // pred_fallthru
          _
      $region32: #{tpu_custom_call.1} parent=5 // pred_fallthru
        _
      %p422 = scmp.le.s32.totalorder 2, %s15
      // Predicated region
      $region41: #{tpu_custom_call.1} parent=5 // pred_check
        %p423 = pneg %p422
      $region42: #{tpu_custom_call.1} parent=5 // pred_check_branch
        %425 = sbr.rel (%p423) target = $region44
      $region43: #{tpu_custom_call.1} parent=5 // pred_region
        %s426 = ssub.s32 %s15, 2
        // Predicated region
        $region45: #{tpu_custom_call.1} parent=43 // pred_check
          %p427 = pneg %p128
        $region46: #{tpu_custom_call.1} parent=43 // pred_check_branch
          %429 = sbr.rel (%p427) target = $region48
        $region47: #{tpu_custom_call.1} parent=43 // pred_region
          %s430 = sand.u32 %s113, 1
          %s431 = scalar_lea.sflag [#allocation4], %s430
          %s432 = sand.u32 %s113, 1
          %s433 = smul.addr %s432, 8
          %s434 = scalar_lea.vmem [#allocation5], %s433
          %435 = dma.done %s431, 128
        $region48: #{tpu_custom_call.1} parent=43 // pred_fallthru
          _
      $region44: #{tpu_custom_call.1} parent=5 // pred_fallthru
        _
    $region6: #{tpu_custom_call.1} parent=1 // loop_footer
      %s19 = sadd.s32 1, %s15
    $region7: #{tpu_custom_call.1} parent=1 // loop_footer_branch
      %14 = sbr.rel target = $region3
    $region8: #{tpu_custom_call.1} parent=1 // loop_exit
      _
    %436 = vsyncpa [#allocation3], 1
    %s437 = scalar_lea.sflag [#allocation3], 1
    %438 = vsyncpa %s437, 1
    %439 = vsyncpa [#allocation4], 1
    %s440 = scalar_lea.sflag [#allocation4], 1
    %441 = vsyncpa %s440, 1

</llo_original>
